<compile_context>
chip_gen: v7x
topology: tpu7x:2x2x1
jax: 0.10.0
libtpu: 0.0.40
codegen_flags: <defaults>
</compile_context>

<pallas_src>
import functools

import jax
import jax.numpy as jnp
from jax.experimental import pallas as pl
from jax.experimental.pallas import tpu as pltpu


def _round_up(n, m):
    return (n + m - 1) // m * m


def _cdiv(a, b):
    return (a + b - 1) // b


def _tpu_generation():
    """Best-effort TPU generation (2..7) from the device-kind string."""
    try:
        kind = jax.devices()[0].device_kind.lower()
    except Exception:
        return None
    for tag, gen in (("v7", 7), ("7x", 7), ("v6", 6), ("v5", 5), ("v4", 4),
                     ("v3", 3), ("v2", 2)):
        if tag in kind:
            return gen
    return None


# ----------------------------- parameter-setup glue -------------------------

def weight_quant(w, num_bits=1):
    """BitNet 1-bit weight quant -> (ternary pattern in {-1,0,+1}, 1/s).

    Matches weight_quant_new: s = 1 / clamp(mean(|w|), 1e-5); the dequantized
    weight equals pattern * (1/s) exactly for ternary patterns.
    """
    w = w.astype(jnp.float32)
    s = 1.0 / jnp.maximum(jnp.mean(jnp.abs(w)), 1e-5)
    pattern = jnp.clip(jnp.round(w * s), -1.0, 1.0)
    return pattern, (1.0 / s).astype(jnp.float32)


def prepare_bitnet_mlp_params(w_gate, w_up, w_down, rms_weight, *,
                              use_int8=None, lane_mult=None, i_tile=None):
    """One-time (load-time) weight prep.  Do NOT call per forward pass.

    Returns a dict of prepacked operands + static tiling info for
    bitnet_mlp_apply().  Weights are ternary patterns shipped as int8 (v5e/v6e
    MXU int path) or bf16 (v7x & others); the 1/s weight scales and per-row
    activation dequant scales are folded in AFTER the exact integer matmuls.
    """
    i, h = w_gate.shape                       # PyTorch layout: (out, in)
    assert w_up.shape == (i, h) and w_down.shape == (h, i)
    assert rms_weight.shape == (i,)

    gen = _tpu_generation()
    if use_int8 is None:
        use_int8 = gen in (5, 6)              # v7x MXU is bf16/fp8 only
    if lane_mult is None:
        lane_mult = 256 if gen in (6, 7) else 128   # 2x256^2 MXU on v6e/v7x

    h_pad = _round_up(h, lane_mult)
    i_min = _round_up(i, lane_mult)
    if i_tile is None:
        i_tile = min(i_min, 512)              # stream weights in <=512-wide blocks
    assert i_tile % lane_mult == 0
    i_pad = _round_up(i, i_tile)
    n_i = i_pad // i_tile

    # f32 accumulation of the bf16 integer dots is exact while K*127 < 2^24.
    assert max(h_pad, i_pad) * 127 < (1 << 24), "K too large for exact f32 acc"

    w_dtype = jnp.int8 if use_int8 else jnp.bfloat16

    wg_pat, ws_g = weight_quant(w_gate)       # (I, H), scalar 1/s
    wu_pat, ws_u = weight_quant(w_up)
    wd_pat, ws_d = weight_quant(w_down)       # (H, I), scalar 1/s

    pad_hi = ((0, h_pad - h), (0, i_pad - i))
    pad_ih = ((0, i_pad - i), (0, h_pad - h))
    wgT = jnp.pad(wg_pat.T, pad_hi)           # (Hp, Ip) ternary
    wuT = jnp.pad(wu_pat.T, pad_hi)
    # Interleave gate/up per I tile so block ki is contiguous: [g_ki | u_ki].
    wgu = jnp.stack([wgT.reshape(h_pad, n_i, i_tile),
                     wuT.reshape(h_pad, n_i, i_tile)], axis=2)
    wgu = wgu.reshape(h_pad, 2 * i_pad).astype(w_dtype)        # (Hp, 2*Ip)
    wd = jnp.pad(wd_pat.T, pad_ih).astype(w_dtype)             # (Ip, Hp)
    gamma = jnp.pad(rms_weight.astype(jnp.float32),
                    (0, i_pad - i)).reshape(1, i_pad)
    wscales = jnp.stack([ws_g, ws_u, ws_d]).astype(jnp.float32)  # (3,)

    return dict(wgu=wgu, wd=wd, gamma=gamma, wscales=wscales,
                h=h, i=i, h_pad=h_pad, i_pad=i_pad,
                i_tile=i_tile, n_i=n_i, use_int8=bool(use_int8),
                generation=gen)


# --------------------------------- kernel -----------------------------------

def _bitnet_mlp_kernel(scale_ref, x_ref, wgu_ref, wd_ref, gamma_ref, o_ref,
                       xq_ref, inv_sx_ref, h_ref, ssq_ref, hgmax_ref,
                       qrow_ref, oscale_ref, acc_ref,
                       *, eps, i_true, i_tile, n_i, mm_dtype, acc_dtype):
    # grid = (token_tiles, 2*n_i): s < n_i  -> phase 1 (gate|up, stats)
    #                              s >= n_i -> phase 2 (requant + down-proj)
    s = pl.program_id(1)
    ws_g = scale_ref[0]          # 1/s_gate
    ws_u = scale_ref[1]          # 1/s_up
    ws_d = scale_ref[2]          # 1/s_down

    # ---- per-token-tile init (first I block only) ---------------------------
    @pl.when(s == 0)
    def _init():
        x = x_ref[...].astype(jnp.float32)
        amax = jnp.maximum(jnp.max(jnp.abs(x), axis=-1, keepdims=True), 1e-5)
        xq = jnp.clip(jnp.round(x * (127.0 / amax)), -128.0, 127.0)
        xq_ref[...] = xq.astype(mm_dtype)            # integer pattern, exact
        inv_sx_ref[...] = amax * (1.0 / 127.0)       # per-row dequant 1/s_x
        ssq_ref[...] = jnp.zeros_like(ssq_ref)
        hgmax_ref[...] = jnp.zeros_like(hgmax_ref)

    # ---- phase 1: fused gate|up projection over streamed I blocks -----------
    @pl.when(s < n_i)
    def _gate_up():
        ki = s
        gu = jnp.dot(xq_ref[...], wgu_ref[...],
                     preferred_element_type=acc_dtype).astype(jnp.float32)
        inv_sx = inv_sx_ref[...]
        gate = gu[:, :i_tile] * (inv_sx * ws_g)      # exact per-row dequant
        up_raw = gu[:, i_tile:]                      # up scale elided: RMSNorm is
                                                     # invariant to per-row scalars
        # SiLU via EUP: exp(-g) + approx reciprocal (no exact VPU divide).
        e = jnp.exp(-jnp.clip(gate, -30.0, 30.0))
        h_raw = gate * pl.reciprocal(1.0 + e, approx=True) * up_raw
        hg = h_raw * gamma_ref[...]
        ssq_ref[...] += jnp.sum(h_raw * h_raw, axis=-1, keepdims=True)
        hgmax_ref[...] = jnp.maximum(
            hgmax_ref[...], jnp.max(jnp.abs(hg), axis=-1, keepdims=True))
        h_ref[ki] = hg

    # ---- finalize RMSNorm / 2nd-quant row statistics -------------------------
    @pl.when(s == n_i)
    def _finalize_stats():
        c = inv_sx_ref[...] * ws_u                   # elided up scale (per row)
        # Exact eps compensation: rsqrt(var + eps) on the scaled h equals
        # rsqrt(var_raw + eps/c^2) on the unscaled h we actually computed.
        r = jax.lax.rsqrt(ssq_ref[...] * (1.0 / i_true) + eps / (c * c))
        amax2 = jnp.maximum(r * hgmax_ref[...], 1e-5)
        qrow_ref[...] = r * (127.0 / amax2)          # h -> int8 pattern factor
        oscale_ref[...] = amax2 * (ws_d / 127.0)     # (1/s_h) * (1/s_wd)
        acc_ref[...] = jnp.zeros_like(acc_ref)

    # ---- phase 2: down projection over streamed I blocks ---------------------
    @pl.when(s >= n_i)
    def _down():
        kj = s - n_i
        hq = jnp.clip(jnp.round(h_ref[kj] * qrow_ref[...]), -128.0, 127.0)
        part = jnp.dot(hq.astype(mm_dtype), wd_ref[...],
                       preferred_element_type=acc_dtype)
        acc_ref[...] += part.astype(jnp.float32)

    @pl.when(s == 2 * n_i - 1)
    def _store():
        o_ref[...] = (acc_ref[...] * oscale_ref[...]).astype(o_ref.dtype)


# --------------------------------- wrapper ----------------------------------

def bitnet_mlp_apply(params, x, *, eps=1e-6, tm=None):
    """Run the fused BitNet MLP kernel on x: (batch, seq, hidden)."""
    b, s_len, h = x.shape
    assert h == params["h"]
    h_pad, i_pad = params["h_pad"], params["i_pad"]
    i_tile, n_i = params["i_tile"], params["n_i"]
    use_int8 = params["use_int8"]
    gen = params["generation"]

    mm_dtype = jnp.int8 if use_int8 else jnp.bfloat16
    acc_dtype = jnp.int32 if use_int8 else jnp.float32
    w_itemsize = 1 if use_int8 else 2
    x_itemsize = jnp.dtype(x.dtype).itemsize
    out_itemsize = x_itemsize

    # ---- token tiling: generation-aware default + tail-pad balancing --------
    tokens = b * s_len
    row_align = 32 if use_int8 else 16
    if tm is None:
        tm = 128 if gen == 7 else 256      # smaller f32 live set on 64 MiB v7x
    tm = max(row_align, min(int(tm), _round_up(tokens, row_align)))
    n_t = _cdiv(tokens, tm)
    tm = _round_up(_cdiv(tokens, n_t), row_align)   # balance tiles -> tiny tail pad
    tokens_p = n_t * tm
    # TODO(synk): on v7x (2 TensorCores) prefer an even n_t so the parallel
    # token axis keeps both cores busy in small-batch / decode regimes.

    x2d = jnp.pad(x.reshape(tokens, h),
                  ((0, tokens_p - tokens), (0, h_pad - h)))

    kernel = functools.partial(
        _bitnet_mlp_kernel, eps=float(eps), i_true=params["i"],
        i_tile=i_tile, n_i=n_i, mm_dtype=mm_dtype, acc_dtype=acc_dtype)

    # ---- advisory cost estimate ---------------------------------------------
    flops = int(6 * tokens_p * h_pad * i_pad)
    transcendentals = int(2 * tokens_p * i_pad + tokens_p)
    weight_bytes = (params["wgu"].size + params["wd"].size) * w_itemsize
    bytes_acc = int(tokens_p * h_pad * (x_itemsize + out_itemsize)
                    + n_t * (weight_bytes + params["gamma"].size * 4) + 64)

    # ---- VMEM budget: streamed weight blocks + scratch + f32 temporaries ----
    vmem_est = (2 * h_pad * 2 * i_tile * w_itemsize        # W_gu block (2 bufs)
                + 2 * i_tile * h_pad * w_itemsize          # W_d  block (2 bufs)
                + 2 * i_tile * 4                           # gamma block
                + 2 * tm * h_pad * (x_itemsize + out_itemsize)  # x / out tiles
                + tm * h_pad * (w_itemsize + 4)            # xq + f32 accumulator
                + n_i * tm * i_tile * 4                    # h*gamma scratch
                + 8 * tm * i_tile * 4                      # f32 temps headroom
                + (2 << 20))
    vmem_cap = (56 * 2**20 if gen == 7
                else (100 * 2**20 if gen in (4, 5, 6) else 64 * 2**20))
    vmem_limit = int(min(vmem_cap, max(vmem_est, 32 * 2**20)))
    # TODO(synk): for very large hidden sizes (h_pad * i_tile weight block no
    # longer fitting the VMEM cap) also tile the H dimension.

    n_s = 2 * n_i
    grid_spec = pltpu.PrefetchScalarGridSpec(
        num_scalar_prefetch=0,
        grid=(n_t, n_s),
        in_specs=[
            pl.BlockSpec(memory_space=pltpu.MemorySpace.SMEM),     # weight scales
            pl.BlockSpec((tm, h_pad), lambda t, s: (t, 0)),        # x tile
            pl.BlockSpec((h_pad, 2 * i_tile),                      # W_gu block
                         lambda t, s: (0, jnp.minimum(s, n_i - 1))),
            pl.BlockSpec((i_tile, h_pad),                          # W_d block
                         lambda t, s: (jnp.maximum(s - n_i, 0), 0)),
            pl.BlockSpec((1, i_tile),                              # gamma block
                         lambda t, s: (0, jnp.minimum(s, n_i - 1))),
        ],
        out_specs=pl.BlockSpec((tm, h_pad), lambda t, s: (t, 0)),
        scratch_shapes=[
            pltpu.VMEM((tm, h_pad), mm_dtype),           # xq integer pattern
            pltpu.VMEM((tm, 1), jnp.float32),            # 1/s_x
            pltpu.VMEM((n_i, tm, i_tile), jnp.float32),  # h*gamma blocks
            pltpu.VMEM((tm, 1), jnp.float32),            # sum(h^2)
            pltpu.VMEM((tm, 1), jnp.float32),            # max|h*gamma|
            pltpu.VMEM((tm, 1), jnp.float32),            # requant multiplier
            pltpu.VMEM((tm, 1), jnp.float32),            # output dequant scale
            pltpu.VMEM((tm, h_pad), jnp.float32),        # down-proj accumulator
        ],
    )

    out2d = pl.pallas_call(
        kernel,
        out_shape=jax.ShapeDtypeStruct((tokens_p, h_pad), x.dtype),
        grid_spec=grid_spec,
        compiler_params=pltpu.CompilerParams(
            dimension_semantics=("parallel", "arbitrary"),
            vmem_limit_bytes=vmem_limit),
        cost_estimate=pl.CostEstimate(flops=flops,
                                      transcendentals=transcendentals,
                                      bytes_accessed=bytes_acc),
    )(params["wscales"], x2d, params["wgu"], params["wd"], params["gamma"])

    return out2d[:tokens, :h].reshape(b, s_len, h)


def bitnet_mlp(x, w_gate, w_up, w_down, rms_weight, *, eps=1e-6, tm=None,
               use_int8=None):
    """Convenience one-shot entry point (prep + apply).

    For production inference call prepare_bitnet_mlp_params() once at model
    load time and reuse the result with bitnet_mlp_apply().  Under an outer
    jit, pass use_int8 explicitly (the runtime fallback below only triggers
    for eagerly-raised lowering errors).
    """
    if use_int8 is None:
        use_int8 = _tpu_generation() in (5, 6)
    if use_int8:
        try:
            p = prepare_bitnet_mlp_params(w_gate, w_up, w_down, rms_weight,
                                          use_int8=True)
            return bitnet_mlp_apply(p, x, eps=eps, tm=tm)
        except Exception:
            pass  # int8 MXU path unavailable on this chip/jax -> bf16 path
    p = prepare_bitnet_mlp_params(w_gate, w_up, w_down, rms_weight,
                                  use_int8=False)
    return bitnet_mlp_apply(p, x, eps=eps, tm=tm)


# --------------------------- pure-JAX reference ------------------------------

def _ref(x, w_gate, w_up, w_down, rms_weight, eps=1e-6):
    """Mirror of the torch module (dequantize-then-matmul in f32)."""
    def w_deq(w):
        w = w.astype(jnp.float32)
        s = 1.0 / jnp.maximum(jnp.mean(jnp.abs(w)), 1e-5)
        return jnp.clip(jnp.round(w * s), -1.0, 1.0) / s

    def act_q(v):
        s = 127.0 / jnp.maximum(jnp.max(jnp.abs(v), axis=-1, keepdims=True), 1e-5)
        return jnp.clip(jnp.round(v * s), -128.0, 127.0) / s

    xq = act_q(x.astype(jnp.float32))
    gate = xq @ w_deq(w_gate).T
    up = xq @ w_deq(w_up).T
    h = gate * jax.nn.sigmoid(gate) * up
    var = jnp.mean(h * h, axis=-1, keepdims=True)
    h = rms_weight * (h * jax.lax.rsqrt(var + eps))
    hq = act_q(h)
    return hq @ w_deq(w_down).T


# ----------------------------------- main ------------------------------------

if __name__ == "__main__":
    batch, seq, hidden, intermediate = 2, 8, 32, 64

    key = jax.random.PRNGKey(0)
    kx, kg, ku, kd = jax.random.split(key, 4)
    x = jax.random.normal(kx, (batch, seq, hidden), dtype=jnp.float32)
    # PyTorch nn.Linear weight layout: (out_features, in_features)
    w_gate = jax.random.normal(kg, (intermediate, hidden), jnp.float32) * 0.05
    w_up = jax.random.normal(ku, (intermediate, hidden), jnp.float32) * 0.05
    w_down = jax.random.normal(kd, (hidden, intermediate), jnp.float32) * 0.05
    rms_w = jnp.ones((intermediate,), jnp.float32)  # BitnetRMSNorm init

    out = bitnet_mlp(x, w_gate, w_up, w_down, rms_w, eps=1e-6)
    out = jax.block_until_ready(out)
    assert out.shape == (batch, seq, hidden)
    assert bool(jnp.all(jnp.isfinite(out)))

    ref = _ref(x, w_gate, w_up, w_down, rms_w, eps=1e-6)
    # The kernel folds weight / activation quant scales in AFTER the exact
    # integer matmuls and uses an EUP approx reciprocal inside SiLU; either can
    # move the second 8-bit re-quantization across a .5 boundary relative to the
    # dequantize-first reference, so a modest tolerance is used.
    assert jnp.allclose(out, ref, atol=2e-2, rtol=2e-2), (
        f"mismatch vs reference: max abs err {jnp.max(jnp.abs(out - ref)):.3e}")

    print("KERNEL_OK")
</pallas_src>

<mosaic_0001>
module attributes {stable_mosaic.version = 11 : i64} {
  func.func @_bitnet_mlp_kernel(%arg0: i32, %arg1: i32, %arg2: memref<3xf32, #tpu.memory_space<smem>>, %arg3: memref<16x128xf32, #tpu.memory_space<vmem>>, %arg4: memref<128x256xbf16, #tpu.memory_space<vmem>>, %arg5: memref<128x128xbf16, #tpu.memory_space<vmem>>, %arg6: memref<1x128xf32, #tpu.memory_space<vmem>>, %arg7: memref<16x128xf32, #tpu.memory_space<vmem>>, %arg8: memref<16x128xbf16, #tpu.memory_space<vmem>>, %arg9: memref<16x1xf32, #tpu.memory_space<vmem>>, %arg10: memref<1x16x128xf32, #tpu.memory_space<vmem>>, %arg11: memref<16x1xf32, #tpu.memory_space<vmem>>, %arg12: memref<16x1xf32, #tpu.memory_space<vmem>>, %arg13: memref<16x1xf32, #tpu.memory_space<vmem>>, %arg14: memref<16x1xf32, #tpu.memory_space<vmem>>, %arg15: memref<16x128xf32, #tpu.memory_space<vmem>>) attributes {dimension_semantics = [#tpu.dimension_semantics<parallel>, #tpu.dimension_semantics<arbitrary>], iteration_bounds = array<i64: 1, 2>, scalar_prefetch = 0 : i64, scratch_operands = 8 : i64, tpu.core_type = #tpu.core_type<tc>, window_params = [{transform_indices = @transform_0, window_bounds = array<i64: 3>}, {transform_indices = @transform_1, window_bounds = array<i64: 16, 128>}, {transform_indices = @transform_2, window_bounds = array<i64: 128, 256>}, {transform_indices = @transform_3, window_bounds = array<i64: 128, 128>}, {transform_indices = @transform_4, window_bounds = array<i64: 1, 128>}, {transform_indices = @transform_5, window_bounds = array<i64: 16, 128>}]} {
    %c0 = arith.constant 0 : index
    %0 = memref.load %arg2[%c0] : memref<3xf32, #tpu.memory_space<smem>>
    %c1 = arith.constant 1 : index
    %1 = memref.load %arg2[%c1] : memref<3xf32, #tpu.memory_space<smem>>
    %c2 = arith.constant 2 : index
    %2 = memref.load %arg2[%c2] : memref<3xf32, #tpu.memory_space<smem>>
    %c0_i32 = arith.constant 0 : i32
    %3 = arith.cmpi eq, %arg1, %c0_i32 : i32
    %4 = arith.extui %3 : i1 to i32
    %c0_i32_0 = arith.constant 0 : i32
    %5 = arith.cmpi ne, %4, %c0_i32_0 : i32
    scf.if %5 {
      %c0_8 = arith.constant 0 : index
      %c0_9 = arith.constant 0 : index
      %18 = vector.load %arg3[%c0_8, %c0_9] : memref<16x128xf32, #tpu.memory_space<vmem>>, vector<16x128xf32>
      %19 = math.absf %18 : vector<16x128xf32>
      %cst = arith.constant dense<0xFF800000> : vector<16xf32>
      %20 = vector.multi_reduction <maximumf>, %19, %cst [1] : vector<16x128xf32> to vector<16xf32>
      %21 = vector.shape_cast %20 : vector<16xf32> to vector<16x1xf32>
      %cst_10 = arith.constant 9.99999974E-6 : f32
      %22 = vector.broadcast %cst_10 : f32 to vector<16x1xf32>
      %23 = arith.maximumf %21, %22 : vector<16x1xf32>
      %cst_11 = arith.constant 1.270000e+02 : f32
      %24 = vector.broadcast %cst_11 : f32 to vector<16x1xf32>
      %25 = arith.divf %24, %23 : vector<16x1xf32>
      %26 = vector.broadcast %25 : vector<16x1xf32> to vector<16x128xf32>
      %27 = arith.mulf %18, %26 : vector<16x128xf32>
      %28 = math.roundeven %27 : vector<16x128xf32>
      %cst_12 = arith.constant -1.280000e+02 : f32
      %cst_13 = arith.constant 1.270000e+02 : f32
      %29 = vector.broadcast %cst_12 : f32 to vector<16x128xf32>
      %30 = arith.maximumf %29, %28 : vector<16x128xf32>
      %31 = vector.broadcast %cst_13 : f32 to vector<16x128xf32>
      %32 = arith.minimumf %31, %30 : vector<16x128xf32>
      %33 = arith.truncf %32 : vector<16x128xf32> to vector<16x128xbf16>
      %c0_14 = arith.constant 0 : index
      %c0_15 = arith.constant 0 : index
      %34 = vector.load %arg8[%c0_14, %c0_15] : memref<16x128xbf16, #tpu.memory_space<vmem>>, vector<16x128xbf16>
      tpu.vector_store %arg8[%c0_14, %c0_15], %33 {strides = array<i32>} : memref<16x128xbf16, #tpu.memory_space<vmem>>, vector<16x128xbf16>,
      %cst_16 = arith.constant 0.00787401571 : f32
      %35 = vector.broadcast %cst_16 : f32 to vector<16x1xf32>
      %36 = arith.mulf %23, %35 : vector<16x1xf32>
      %c0_17 = arith.constant 0 : index
      %c0_18 = arith.constant 0 : index
      %37 = vector.load %arg9[%c0_17, %c0_18] : memref<16x1xf32, #tpu.memory_space<vmem>>, vector<16x1xf32>
      tpu.vector_store %arg9[%c0_17, %c0_18], %36 {strides = array<i32>} : memref<16x1xf32, #tpu.memory_space<vmem>>, vector<16x1xf32>,
      %cst_19 = arith.constant 0.000000e+00 : f32
      %38 = vector.broadcast %cst_19 : f32 to vector<16x1xf32>
      %c0_20 = arith.constant 0 : index
      %c0_21 = arith.constant 0 : index
      %39 = vector.load %arg11[%c0_20, %c0_21] : memref<16x1xf32, #tpu.memory_space<vmem>>, vector<16x1xf32>
      tpu.vector_store %arg11[%c0_20, %c0_21], %38 {strides = array<i32>} : memref<16x1xf32, #tpu.memory_space<vmem>>, vector<16x1xf32>,
      %cst_22 = arith.constant 0.000000e+00 : f32
      %40 = vector.broadcast %cst_22 : f32 to vector<16x1xf32>
      %c0_23 = arith.constant 0 : index
      %c0_24 = arith.constant 0 : index
      %41 = vector.load %arg12[%c0_23, %c0_24] : memref<16x1xf32, #tpu.memory_space<vmem>>, vector<16x1xf32>
      tpu.vector_store %arg12[%c0_23, %c0_24], %40 {strides = array<i32>} : memref<16x1xf32, #tpu.memory_space<vmem>>, vector<16x1xf32>,
    } else {
    }
    %c1_i32 = arith.constant 1 : i32
    %6 = arith.cmpi slt, %arg1, %c1_i32 : i32
    %7 = arith.extui %6 : i1 to i32
    %c0_i32_1 = arith.constant 0 : i32
    %8 = arith.cmpi ne, %7, %c0_i32_1 : i32
    scf.if %8 {
      %c0_8 = arith.constant 0 : index
      %c0_9 = arith.constant 0 : index
      %18 = vector.load %arg8[%c0_8, %c0_9] : memref<16x128xbf16, #tpu.memory_space<vmem>>, vector<16x128xbf16>
      %c0_10 = arith.constant 0 : index
      %c0_11 = arith.constant 0 : index
      %19 = vector.load %arg4[%c0_10, %c0_11] : memref<128x256xbf16, #tpu.memory_space<vmem>>, vector<128x256xbf16>
      %cst = arith.constant dense<0.000000e+00> : vector<16x256xf32>
      %20 = tpu.matmul %18, %19, %cst {dimension_numbers = #tpu.dot_dimension_numbers<[1], [0], [0], [1], [0, 0, 1, 1], [], []>} : vector<16x128xbf16>, vector<128x256xbf16>, vector<16x256xf32> -> vector<16x256xf32>
      %c0_12 = arith.constant 0 : index
      %c0_13 = arith.constant 0 : index
      %21 = vector.load %arg9[%c0_12, %c0_13] : memref<16x1xf32, #tpu.memory_space<vmem>>, vector<16x1xf32>
      %22 = vector.extract_strided_slice %20 {offsets = [0, 0], sizes = [16, 128], strides = [1, 1]} : vector<16x256xf32> to vector<16x128xf32>
      %23 = vector.broadcast %0 : f32 to vector<16x1xf32>
      %24 = arith.mulf %21, %23 : vector<16x1xf32>
      %25 = vector.broadcast %24 : vector<16x1xf32> to vector<16x128xf32>
      %26 = arith.mulf %22, %25 : vector<16x128xf32>
      %27 = vector.extract_strided_slice %20 {offsets = [0, 128], sizes = [16, 128], strides = [1, 1]} : vector<16x256xf32> to vector<16x128xf32>
      %cst_14 = arith.constant -3.000000e+01 : f32
      %cst_15 = arith.constant 3.000000e+01 : f32
      %28 = vector.broadcast %cst_14 : f32 to vector<16x128xf32>
      %29 = arith.maximumf %28, %26 : vector<16x128xf32>
      %30 = vector.broadcast %cst_15 : f32 to vector<16x128xf32>
      %31 = arith.minimumf %30, %29 : vector<16x128xf32>
      %cst_16 = arith.constant 0.000000e+00 : f32
      %32 = vector.broadcast %cst_16 : f32 to vector<16x128xf32>
      %33 = arith.subf %32, %31 : vector<16x128xf32>
      %34 = math.exp %33 : vector<16x128xf32>
      %cst_17 = arith.constant 1.000000e+00 : f32
      %35 = vector.broadcast %cst_17 : f32 to vector<16x128xf32>
      %36 = arith.addf %35, %34 : vector<16x128xf32>
      %37 = tpu.reciprocal %36 {approx = true} : vector<16x128xf32> -> vector<16x128xf32>
      %38 = arith.mulf %26, %37 : vector<16x128xf32>
      %39 = arith.mulf %38, %27 : vector<16x128xf32>
      %c0_18 = arith.constant 0 : index
      %c0_19 = arith.constant 0 : index
      %40 = vector.load %arg6[%c0_18, %c0_19] : memref<1x128xf32, #tpu.memory_space<vmem>>, vector<1x128xf32>
      %41 = vector.broadcast %40 : vector<1x128xf32> to vector<16x128xf32>
      %42 = arith.mulf %39, %41 : vector<16x128xf32>
      %c0_20 = arith.constant 0 : index
      %c0_21 = arith.constant 0 : index
      %43 = vector.load %arg11[%c0_20, %c0_21] : memref<16x1xf32, #tpu.memory_space<vmem>>, vector<16x1xf32>
      %44 = arith.mulf %39, %39 : vector<16x128xf32>
      %cst_22 = arith.constant dense<0.000000e+00> : vector<16xf32>
      %45 = vector.multi_reduction <add>, %44, %cst_22 [1] : vector<16x128xf32> to vector<16xf32>
      %46 = vector.shape_cast %45 : vector<16xf32> to vector<16x1xf32>
      %47 = arith.addf %43, %46 : vector<16x1xf32>
      %c0_23 = arith.constant 0 : index
      %c0_24 = arith.constant 0 : index
      %48 = vector.load %arg11[%c0_23, %c0_24] : memref<16x1xf32, #tpu.memory_space<vmem>>, vector<16x1xf32>
      tpu.vector_store %arg11[%c0_23, %c0_24], %47 {strides = array<i32>} : memref<16x1xf32, #tpu.memory_space<vmem>>, vector<16x1xf32>,
      %c0_25 = arith.constant 0 : index
      %c0_26 = arith.constant 0 : index
      %49 = vector.load %arg12[%c0_25, %c0_26] : memref<16x1xf32, #tpu.memory_space<vmem>>, vector<16x1xf32>
      %50 = math.absf %42 : vector<16x128xf32>
      %cst_27 = arith.constant dense<0xFF800000> : vector<16xf32>
      %51 = vector.multi_reduction <maximumf>, %50, %cst_27 [1] : vector<16x128xf32> to vector<16xf32>
      %52 = vector.shape_cast %51 : vector<16xf32> to vector<16x1xf32>
      %53 = arith.maximumf %49, %52 : vector<16x1xf32>
      %c0_28 = arith.constant 0 : index
      %c0_29 = arith.constant 0 : index
      %54 = vector.load %arg12[%c0_28, %c0_29] : memref<16x1xf32, #tpu.memory_space<vmem>>, vector<16x1xf32>
      tpu.vector_store %arg12[%c0_28, %c0_29], %53 {strides = array<i32>} : memref<16x1xf32, #tpu.memory_space<vmem>>, vector<16x1xf32>,
      %55 = arith.index_cast %arg1 : i32 to index
      %c0_30 = arith.constant 0 : index
      %c0_31 = arith.constant 0 : index
      %56 = vector.load %arg10[%55, %c0_30, %c0_31] : memref<1x16x128xf32, #tpu.memory_space<vmem>>, vector<1x16x128xf32>
      %57 = vector.shape_cast %56 : vector<1x16x128xf32> to vector<16x128xf32>
      %58 = vector.shape_cast %42 : vector<16x128xf32> to vector<1x16x128xf32>
      tpu.vector_store %arg10[%55, %c0_30, %c0_31], %58 {strides = array<i32>} : memref<1x16x128xf32, #tpu.memory_space<vmem>>, vector<1x16x128xf32>,
    } else {
    }
    %c1_i32_2 = arith.constant 1 : i32
    %9 = arith.cmpi eq, %arg1, %c1_i32_2 : i32
    %10 = arith.extui %9 : i1 to i32
    %c0_i32_3 = arith.constant 0 : i32
    %11 = arith.cmpi ne, %10, %c0_i32_3 : i32
    scf.if %11 {
      %c0_8 = arith.constant 0 : index
      %c0_9 = arith.constant 0 : index
      %18 = vector.load %arg9[%c0_8, %c0_9] : memref<16x1xf32, #tpu.memory_space<vmem>>, vector<16x1xf32>
      %19 = vector.broadcast %1 : f32 to vector<16x1xf32>
      %20 = arith.mulf %18, %19 : vector<16x1xf32>
      %c0_10 = arith.constant 0 : index
      %c0_11 = arith.constant 0 : index
      %21 = vector.load %arg11[%c0_10, %c0_11] : memref<16x1xf32, #tpu.memory_space<vmem>>, vector<16x1xf32>
      %cst = arith.constant 1.562500e-02 : f32
      %22 = vector.broadcast %cst : f32 to vector<16x1xf32>
      %23 = arith.mulf %21, %22 : vector<16x1xf32>
      %24 = arith.mulf %20, %20 : vector<16x1xf32>
      %cst_12 = arith.constant 9.99999997E-7 : f32
      %25 = vector.broadcast %cst_12 : f32 to vector<16x1xf32>
      %26 = arith.divf %25, %24 : vector<16x1xf32>
      %27 = arith.addf %23, %26 : vector<16x1xf32>
      %28 = math.rsqrt %27 : vector<16x1xf32>
      %c0_13 = arith.constant 0 : index
      %c0_14 = arith.constant 0 : index
      %29 = vector.load %arg12[%c0_13, %c0_14] : memref<16x1xf32, #tpu.memory_space<vmem>>, vector<16x1xf32>
      %30 = arith.mulf %28, %29 : vector<16x1xf32>
      %cst_15 = arith.constant 9.99999974E-6 : f32
      %31 = vector.broadcast %cst_15 : f32 to vector<16x1xf32>
      %32 = arith.maximumf %30, %31 : vector<16x1xf32>
      %cst_16 = arith.constant 1.270000e+02 : f32
      %33 = vector.broadcast %cst_16 : f32 to vector<16x1xf32>
      %34 = arith.divf %33, %32 : vector<16x1xf32>
      %35 = arith.mulf %28, %34 : vector<16x1xf32>
      %c0_17 = arith.constant 0 : index
      %c0_18 = arith.constant 0 : index
      %36 = vector.load %arg13[%c0_17, %c0_18] : memref<16x1xf32, #tpu.memory_space<vmem>>, vector<16x1xf32>
      tpu.vector_store %arg13[%c0_17, %c0_18], %35 {strides = array<i32>} : memref<16x1xf32, #tpu.memory_space<vmem>>, vector<16x1xf32>,
      %cst_19 = arith.constant 1.270000e+02 : f32
      %37 = arith.divf %2, %cst_19 : f32
      %38 = vector.broadcast %37 : f32 to vector<16x1xf32>
      %39 = arith.mulf %32, %38 : vector<16x1xf32>
      %c0_20 = arith.constant 0 : index
      %c0_21 = arith.constant 0 : index
      %40 = vector.load %arg14[%c0_20, %c0_21] : memref<16x1xf32, #tpu.memory_space<vmem>>, vector<16x1xf32>
      tpu.vector_store %arg14[%c0_20, %c0_21], %39 {strides = array<i32>} : memref<16x1xf32, #tpu.memory_space<vmem>>, vector<16x1xf32>,
      %cst_22 = arith.constant 0.000000e+00 : f32
      %41 = vector.broadcast %cst_22 : f32 to vector<16x128xf32>
      %c0_23 = arith.constant 0 : index
      %c0_24 = arith.constant 0 : index
      %42 = vector.load %arg15[%c0_23, %c0_24] : memref<16x128xf32, #tpu.memory_space<vmem>>, vector<16x128xf32>
      tpu.vector_store %arg15[%c0_23, %c0_24], %41 {strides = array<i32>} : memref<16x128xf32, #tpu.memory_space<vmem>>, vector<16x128xf32>,
    } else {
    }
    %c1_i32_4 = arith.constant 1 : i32
    %12 = arith.cmpi sge, %arg1, %c1_i32_4 : i32
    %13 = arith.extui %12 : i1 to i32
    %c0_i32_5 = arith.constant 0 : i32
    %14 = arith.cmpi ne, %13, %c0_i32_5 : i32
    scf.if %14 {
      %c1_i32_8 = arith.constant 1 : i32
      %18 = arith.subi %arg1, %c1_i32_8 : i32
      %19 = arith.index_cast %18 : i32 to index
      %c0_9 = arith.constant 0 : index
      %c0_10 = arith.constant 0 : index
      %20 = vector.load %arg10[%19, %c0_9, %c0_10] : memref<1x16x128xf32, #tpu.memory_space<vmem>>, vector<1x16x128xf32>
      %21 = vector.shape_cast %20 : vector<1x16x128xf32> to vector<16x128xf32>
      %c0_11 = arith.constant 0 : index
      %c0_12 = arith.constant 0 : index
      %22 = vector.load %arg13[%c0_11, %c0_12] : memref<16x1xf32, #tpu.memory_space<vmem>>, vector<16x1xf32>
      %23 = vector.broadcast %22 : vector<16x1xf32> to vector<16x128xf32>
      %24 = arith.mulf %21, %23 : vector<16x128xf32>
      %25 = math.roundeven %24 : vector<16x128xf32>
      %cst = arith.constant -1.280000e+02 : f32
      %cst_13 = arith.constant 1.270000e+02 : f32
      %26 = vector.broadcast %cst : f32 to vector<16x128xf32>
      %27 = arith.maximumf %26, %25 : vector<16x128xf32>
      %28 = vector.broadcast %cst_13 : f32 to vector<16x128xf32>
      %29 = arith.minimumf %28, %27 : vector<16x128xf32>
      %30 = arith.truncf %29 : vector<16x128xf32> to vector<16x128xbf16>
      %c0_14 = arith.constant 0 : index
      %c0_15 = arith.constant 0 : index
      %31 = vector.load %arg5[%c0_14, %c0_15] : memref<128x128xbf16, #tpu.memory_space<vmem>>, vector<128x128xbf16>
      %cst_16 = arith.constant dense<0.000000e+00> : vector<16x128xf32>
      %32 = tpu.matmul %30, %31, %cst_16 {dimension_numbers = #tpu.dot_dimension_numbers<[1], [0], [0], [1], [0, 0, 1, 1], [], []>} : vector<16x128xbf16>, vector<128x128xbf16>, vector<16x128xf32> -> vector<16x128xf32>
      %c0_17 = arith.constant 0 : index
      %c0_18 = arith.constant 0 : index
      %33 = vector.load %arg15[%c0_17, %c0_18] : memref<16x128xf32, #tpu.memory_space<vmem>>, vector<16x128xf32>
      %34 = arith.addf %33, %32 : vector<16x128xf32>
      %c0_19 = arith.constant 0 : index
      %c0_20 = arith.constant 0 : index
      %35 = vector.load %arg15[%c0_19, %c0_20] : memref<16x128xf32, #tpu.memory_space<vmem>>, vector<16x128xf32>
      tpu.vector_store %arg15[%c0_19, %c0_20], %34 {strides = array<i32>} : memref<16x128xf32, #tpu.memory_space<vmem>>, vector<16x128xf32>,
    } else {
    }
    %c1_i32_6 = arith.constant 1 : i32
    %15 = arith.cmpi eq, %arg1, %c1_i32_6 : i32
    %16 = arith.extui %15 : i1 to i32
    %c0_i32_7 = arith.constant 0 : i32
    %17 = arith.cmpi ne, %16, %c0_i32_7 : i32
    scf.if %17 {
      %c0_8 = arith.constant 0 : index
      %c0_9 = arith.constant 0 : index
      %18 = vector.load %arg15[%c0_8, %c0_9] : memref<16x128xf32, #tpu.memory_space<vmem>>, vector<16x128xf32>
      %c0_10 = arith.constant 0 : index
      %c0_11 = arith.constant 0 : index
      %19 = vector.load %arg14[%c0_10, %c0_11] : memref<16x1xf32, #tpu.memory_space<vmem>>, vector<16x1xf32>
      %20 = vector.broadcast %19 : vector<16x1xf32> to vector<16x128xf32>
      %21 = arith.mulf %18, %20 : vector<16x128xf32>
      %c0_12 = arith.constant 0 : index
      %c0_13 = arith.constant 0 : index
      %22 = vector.load %arg7[%c0_12, %c0_13] : memref<16x128xf32, #tpu.memory_space<vmem>>, vector<16x128xf32>
      tpu.vector_store %arg7[%c0_12, %c0_13], %21 {strides = array<i32>} : memref<16x128xf32, #tpu.memory_space<vmem>>, vector<16x128xf32>,
    } else {
    }
    return
  }
  func.func @transform_0(%arg0: i32, %arg1: i32) -> i32 {
    %c0_i32 = arith.constant 0 : i32
    %c0_i32_0 = arith.constant 0 : i32
    return %c0_i32 : i32
  }
  func.func @transform_1(%arg0: i32, %arg1: i32) -> (i32, i32) {
    %c0_i32 = arith.constant 0 : i32
    %c0_i32_0 = arith.constant 0 : i32
    return %arg0, %c0_i32 : i32, i32
  }
  func.func @transform_2(%arg0: i32, %arg1: i32) -> (i32, i32) {
    %c0_i32 = arith.constant 0 : i32
    %0 = arith.minsi %arg1, %c0_i32 : i32
    %c0_i32_0 = arith.constant 0 : i32
    %c0_i32_1 = arith.constant 0 : i32
    return %c0_i32_0, %0 : i32, i32
  }
  func.func @transform_3(%arg0: i32, %arg1: i32) -> (i32, i32) {
    %c1_i32 = arith.constant 1 : i32
    %0 = arith.subi %arg1, %c1_i32 : i32
    %c0_i32 = arith.constant 0 : i32
    %1 = arith.maxsi %0, %c0_i32 : i32
    %c0_i32_0 = arith.constant 0 : i32
    %c0_i32_1 = arith.constant 0 : i32
    return %1, %c0_i32_0 : i32, i32
  }
  func.func @transform_4(%arg0: i32, %arg1: i32) -> (i32, i32) {
    %c0_i32 = arith.constant 0 : i32
    %0 = arith.minsi %arg1, %c0_i32 : i32
    %c0_i32_0 = arith.constant 0 : i32
    %c0_i32_1 = arith.constant 0 : i32
    return %c0_i32_0, %0 : i32, i32
  }
  func.func @transform_5(%arg0: i32, %arg1: i32) -> (i32, i32) {
    %c0_i32 = arith.constant 0 : i32
    %c0_i32_0 = arith.constant 0 : i32
    return %arg0, %c0_i32 : i32, i32
  }
}

</mosaic_0001>

<llo_original>
// kernel: tpu_custom_call.1
$region0: #{tpu_custom_call.1}
  #allocation0 [shape = 'u32[]', space=smem, size = 0x4, offset = 0x4, fixed_abs, tag = 'smem constant byte address 0x4 - core index']
  #allocation1 [shape = 'u32[144,128]{1,0:T(1,128)}', space=vmem, size = 0x12000, scoped, tag = 'internal scratch']
  #allocation2 [shape = 'bf16[16,128]{1,0:T(16,128)(2,1)}', space=vmem, size = 0x1000, scoped, tag = 'scratch operand']
  #allocation3 [shape = 'f32[16,1]{1,0:T(8,128)}', space=vmem, size = 0x2000, scoped, tag = 'scratch operand']
  #allocation4 [shape = 'f32[1,16,128]{2,1,0:T(8,128)}', space=vmem, size = 0x2000, scoped, tag = 'scratch operand']
  #allocation5 [shape = 'f32[16,1]{1,0:T(8,128)}', space=vmem, size = 0x2000, scoped, tag = 'scratch operand']
  #allocation6 [shape = 'f32[16,1]{1,0:T(8,128)}', space=vmem, size = 0x2000, scoped, tag = 'scratch operand']
  #allocation7 [shape = 'f32[16,1]{1,0:T(8,128)}', space=vmem, size = 0x2000, scoped, tag = 'scratch operand']
  #allocation8 [shape = 'f32[16,1]{1,0:T(8,128)}', space=vmem, size = 0x2000, scoped, tag = 'scratch operand']
  #allocation9 [shape = 'f32[16,128]{1,0:T(8,128)}', space=vmem, size = 0x2000, scoped, tag = 'scratch operand']
  %s0 = inlined_call_operand.hbm [shape: f32[3], index: 0, kind: input, shape index: {}]
  %s1 = inlined_call_operand.hbm [shape: f32[16,128], index: 1, kind: input, shape index: {}]
  %s2 = inlined_call_operand.hbm [shape: bf16[128,256], index: 2, kind: input, shape index: {}]
  %s3 = inlined_call_operand.hbm [shape: bf16[128,128], index: 3, kind: input, shape index: {}]
  %s4 = inlined_call_operand.vmem [shape: f32[1,128], index: 4, kind: input, shape index: {}]
  %s5 = inlined_call_operand.hbm [shape: f32[16,128], index: 5, kind: output, shape index: {}]
  %s6 = sld [smem:[#allocation0]]
  $region89: #{tpu_custom_call.1} parent=0
    _
  %s8 = ssub.s32 1, %s6
  %s9 = scalar_select 0, %s8, %s6
  $region1: #{tpu_custom_call.1} parent=0
    #allocation10 [shape = 'u8[512]{0}', space=smem, size = 0x200, scoped, tag = 'input window, operand 0, single buffered']
    #allocation11 [shape = 's32[2]{0}', space=sflag, size = 0x8, scoped, tag = 'scoped memory for tpu_custom_call.1']
    #allocation12 [shape = 's32[2]{0}', space=sflag, size = 0x8, scoped, tag = 'scoped memory for tpu_custom_call.1']
    #allocation13 [shape = 's32[2]{0}', space=sflag, size = 0x8, scoped, tag = 'scoped memory for tpu_custom_call.1']
    #allocation14 [shape = 'u8[8192]{0}', space=vmem, size = 0x2000, scoped, tag = 'input window, operand 1, single buffered']
    #allocation15 [shape = 'u8[131072]{0}', space=vmem, size = 0x20000, scoped, tag = 'input window, operand 2']
    #allocation16 [shape = 's32[2]{0}', space=sflag, size = 0x8, scoped, tag = 'scoped memory for tpu_custom_call.1']
    #allocation17 [shape = 'u8[65536]{0}', space=vmem, size = 0x10000, scoped, tag = 'input window, operand 3']
    #allocation18 [shape = 'u8[8192]{0}', space=vmem, size = 0x2000, scoped, tag = 'output window, operand 0, single buffered']
    %10 = vsyncpa [#allocation13], 0
    %11 = vsyncpa [#allocation11], 0
    %12 = vsyncpa [#allocation16], 0
    %s13 = scalar_lea.sflag [#allocation16], 1
    %14 = vsyncpa %s13, 0
    %15 = vsyncpa [#allocation12], 0
    loop: start=0, step=1, limit=4
    $region2: #{tpu_custom_call.1} parent=1 // loop_pre_header
      _
    $region3: #{tpu_custom_call.1} parent=1 // loop_header
      %s17 = sphi 0, %s21
      %p18 = scmp.ge.s32.totalorder %s17, 4
      %s24 = sphi 0, %s36
      %s25 = sphi 0, %s32
      %s26 = sphi 0, %s24
      %s27 = sphi 0, %s25
      %s28 = sphi 0, %s26
      %s29 = sphi 0, %s27
      %s37 = sphi 0, %s37
      %s39 = sphi 0, %s37
      %s40 = sphi 0, %s39
      %s54 = sphi 0, %s40
      %s60 = sphi 0, %s62
      %s63 = sphi 0, %s60
      %s64 = sphi 0, %s63
      %s80 = sphi 0, %s64
      %s90 = sphi 0, %s92
      %s93 = sphi 0, %s90
      %s94 = sphi 0, %s93
      %s110 = sphi 0, %s94
      %s122 = sphi 0, %s124
      %s125 = sphi 0, %s122
      %s126 = sphi 0, %s125
      %s142 = sphi 0, %s126
      %s152 = sphi 0, %s154
      %s155 = sphi 0, %s152
      %s156 = sphi 0, %s155
      %s172 = sphi 0, %s156
      %s178 = sphi 0, %s180
      %s181 = sphi 0, %s178
      %s182 = sphi 0, %s181
      %s198 = sphi 0, %s182
    $region4: #{tpu_custom_call.1} parent=1 // loop_header_branch
      %20 = sbr.rel (%p18) target = $region8
    $region5: #{tpu_custom_call.1} parent=1 // loop_body
      %s22 = ssub.s32 %s17, 1
      %s23 = ssub.s32 %s17, 2
      %s30 = sadd.s32 1, %s25
      %p31 = scmp.ge.s32.totalorder %s30, 2
      %s32 = scalar_select %p31, 0, %s30
      %s33 = sadd.s32 1, %s24
      %s34 = scalar_select %p31, %s33, %s24
      %p35 = scmp.ge.s32.totalorder %s34, 1
      %s36 = scalar_select %p35, 0, %s34
      %s38 = sadd.s32 %s37, 1
      %p41 = scmp.eq.s32.totalorder %s17, 1
      %p42 = scmp.ne.s32.totalorder %s37, %s39
      %p43 = scmp.eq.s32.totalorder %s17, 0
      %p44 = por %p42, %p43
      %p45 = scmp.ne.s32.totalorder %s37, %s39
      %p46 = scmp.eq.s32.totalorder %s22, 1
      %p47 = por %p45, %p46
      %p48 = scmp.ne.s32.totalorder %s39, %s40
      %p49 = scmp.eq.s32.totalorder %s22, 0
      %p50 = por %p48, %p49
      %p51 = scmp.ne.s32.totalorder %s39, %s40
      %p52 = scmp.eq.s32.totalorder %s23, 1
      %p53 = por %p51, %p52
      %p55 = scmp.ne.s32.totalorder %s40, %s54
      %p56 = scmp.eq.s32.totalorder %s23, 0
      %p57 = por %p55, %p56
      %s58 = ssub.s32 %s24, %s36
      %p59 = scmp.eq.s32.totalorder %s58, 0
      %s61 = sadd.s32 %s60, 1
      %s62 = scalar_select %p59, %s60, %s61
      %p65 = pneg %p59
      %p66 = scmp.eq.s32.totalorder %s17, 1
      %p67 = por %p65, %p66
      %p68 = scmp.ne.s32.totalorder %s60, %s63
      %p69 = scmp.eq.s32.totalorder %s17, 0
      %p70 = por %p68, %p69
      %p71 = scmp.ne.s32.totalorder %s60, %s63
      %p72 = scmp.eq.s32.totalorder %s22, 1
      %p73 = por %p71, %p72
      %p74 = scmp.ne.s32.totalorder %s63, %s64
      %p75 = scmp.eq.s32.totalorder %s22, 0
      %p76 = por %p74, %p75
      %p77 = scmp.ne.s32.totalorder %s63, %s64
      %p78 = scmp.eq.s32.totalorder %s23, 1
      %p79 = por %p77, %p78
      %p81 = scmp.ne.s32.totalorder %s64, %s80
      %p82 = scmp.eq.s32.totalorder %s23, 0
      %p83 = por %p81, %p82
      %p84 = scmp.lt.s32.totalorder %s25, 0
      %s85 = scalar_select %p84, %s25, 0
      %p86 = scmp.lt.s32.totalorder %s32, 0
      %s87 = scalar_select %p86, %s32, 0
      %s88 = ssub.s32 %s85, %s87
      %p89 = scmp.eq.s32.totalorder %s88, 0
      %s91 = sadd.s32 %s90, 1
      %s92 = scalar_select %p89, %s90, %s91
      %p95 = pneg %p89
      %p96 = scmp.eq.s32.totalorder %s17, 1
      %p97 = por %p95, %p96
      %p98 = scmp.ne.s32.totalorder %s90, %s93
      %p99 = scmp.eq.s32.totalorder %s17, 0
      %p100 = por %p98, %p99
      %p101 = scmp.ne.s32.totalorder %s90, %s93
      %p102 = scmp.eq.s32.totalorder %s22, 1
      %p103 = por %p101, %p102
      %p104 = scmp.ne.s32.totalorder %s93, %s94
      %p105 = scmp.eq.s32.totalorder %s22, 0
      %p106 = por %p104, %p105
      %p107 = scmp.ne.s32.totalorder %s93, %s94
      %p108 = scmp.eq.s32.totalorder %s23, 1
      %p109 = por %p107, %p108
      %p111 = scmp.ne.s32.totalorder %s94, %s110
      %p112 = scmp.eq.s32.totalorder %s23, 0
      %p113 = por %p111, %p112
      %s114 = ssub.s32 %s25, 1
      %p115 = scmp.gt.s32.totalorder %s114, 0
      %s116 = scalar_select %p115, %s114, 0
      %s117 = ssub.s32 %s32, 1
      %p118 = scmp.gt.s32.totalorder %s117, 0
      %s119 = scalar_select %p118, %s117, 0
      %s120 = ssub.s32 %s116, %s119
      %p121 = scmp.eq.s32.totalorder %s120, 0
      %s123 = sadd.s32 %s122, 1
      %s124 = scalar_select %p121, %s122, %s123
      %p127 = pneg %p121
      %p128 = scmp.eq.s32.totalorder %s17, 1
      %p129 = por %p127, %p128
      %p130 = scmp.ne.s32.totalorder %s122, %s125
      %p131 = scmp.eq.s32.totalorder %s17, 0
      %p132 = por %p130, %p131
      %p133 = scmp.ne.s32.totalorder %s122, %s125
      %p134 = scmp.eq.s32.totalorder %s22, 1
      %p135 = por %p133, %p134
      %p136 = scmp.ne.s32.totalorder %s125, %s126
      %p137 = scmp.eq.s32.totalorder %s22, 0
      %p138 = por %p136, %p137
      %p139 = scmp.ne.s32.totalorder %s125, %s126
      %p140 = scmp.eq.s32.totalorder %s23, 1
      %p141 = por %p139, %p140
      %p143 = scmp.ne.s32.totalorder %s126, %s142
      %p144 = scmp.eq.s32.totalorder %s23, 0
      %p145 = por %p143, %p144
      %p146 = scmp.lt.s32.totalorder %s25, 0
      %s147 = scalar_select %p146, %s25, 0
      %p148 = scmp.lt.s32.totalorder %s32, 0
      %s149 = scalar_select %p148, %s32, 0
      %s150 = ssub.s32 %s147, %s149
      %p151 = scmp.eq.s32.totalorder %s150, 0
      %s153 = sadd.s32 %s152, 1
      %s154 = scalar_select %p151, %s152, %s153
      %p157 = pneg %p151
      %p158 = scmp.eq.s32.totalorder %s17, 1
      %p159 = por %p157, %p158
      %p160 = scmp.ne.s32.totalorder %s152, %s155
      %p161 = scmp.eq.s32.totalorder %s17, 0
      %p162 = por %p160, %p161
      %p163 = scmp.ne.s32.totalorder %s152, %s155
      %p164 = scmp.eq.s32.totalorder %s22, 1
      %p165 = por %p163, %p164
      %p166 = scmp.ne.s32.totalorder %s155, %s156
      %p167 = scmp.eq.s32.totalorder %s22, 0
      %p168 = por %p166, %p167
      %p169 = scmp.ne.s32.totalorder %s155, %s156
      %p170 = scmp.eq.s32.totalorder %s23, 1
      %p171 = por %p169, %p170
      %p173 = scmp.ne.s32.totalorder %s156, %s172
      %p174 = scmp.eq.s32.totalorder %s23, 0
      %p175 = por %p173, %p174
      %s176 = ssub.s32 %s24, %s36
      %p177 = scmp.eq.s32.totalorder %s176, 0
      %s179 = sadd.s32 %s178, 1
      %s180 = scalar_select %p177, %s178, %s179
      %p183 = pneg %p177
      %p184 = scmp.eq.s32.totalorder %s17, 1
      %p185 = por %p183, %p184
      %p186 = scmp.ne.s32.totalorder %s178, %s181
      %p187 = scmp.eq.s32.totalorder %s17, 0
      %p188 = por %p186, %p187
      %p189 = scmp.ne.s32.totalorder %s178, %s181
      %p190 = scmp.eq.s32.totalorder %s22, 1
      %p191 = por %p189, %p190
      %p192 = scmp.ne.s32.totalorder %s181, %s182
      %p193 = scmp.eq.s32.totalorder %s22, 0
      %p194 = por %p192, %p193
      %p195 = scmp.ne.s32.totalorder %s181, %s182
      %p196 = scmp.eq.s32.totalorder %s23, 1
      %p197 = por %p195, %p196
      %p199 = scmp.ne.s32.totalorder %s182, %s198
      %p200 = scmp.eq.s32.totalorder %s23, 0
      %p201 = por %p199, %p200
      %p202 = scmp.le.s32.totalorder 1, %s17
      %p203 = scmp.lt.s32.totalorder %s17, 3
      %p204 = pnand %p202, %p203
      %p205 = pneg %p204
      // Predicated region
      $region9: #{tpu_custom_call.1} parent=5 // pred_check
        _
      $region10: #{tpu_custom_call.1} parent=5 // pred_check_branch
        %207 = sbr.rel (%p204) target = $region12
      $region11: #{tpu_custom_call.1} parent=5 // pred_region
        %s208 = ssub.s32 %s17, 1
        // Predicated region
        $region13: #{tpu_custom_call.1} parent=11 // pred_check
          %p209 = pneg %p50
        $region14: #{tpu_custom_call.1} parent=11 // pred_check_branch
          %211 = sbr.rel (%p209) target = $region16
        $region15: #{tpu_custom_call.1} parent=11 // pred_region
          %s213 = ssub.s32 16, 16
          %214 = vsyncadd [#allocation13], %s213
          %217 = dma.hbm_to_smem %s0, 16, [#allocation10], [#allocation13]
        $region16: #{tpu_custom_call.1} parent=11 // pred_fallthru
          _
        // Predicated region
        $region17: #{tpu_custom_call.1} parent=11 // pred_check
          %p218 = pneg %p76
        $region18: #{tpu_custom_call.1} parent=11 // pred_check_branch
          %220 = sbr.rel (%p218) target = $region20
        $region19: #{tpu_custom_call.1} parent=11 // pred_region
          %s221 = smul.u32 2, %s26
          %s223 = ssub.s32 256, 256
          %224 = vsyncadd [#allocation11], %s223
          %s225 = smul.addr %s221, 128
          %s226 = scalar_lea.hbm %s1, %s225
          %s227 = sshll.u32 [#allocation14], 4
          %s228 = int_to_ptr.vmem [resolvable:$true] %s227
          %233 = dma.hbm_to_vmem [thread:$0]  %s226, 256, %s228, [#allocation11], 128, 128, 8
        $region20: #{tpu_custom_call.1} parent=11 // pred_fallthru
          _
      $region12: #{tpu_custom_call.1} parent=5 // pred_fallthru
        _
      %p234 = scmp.lt.s32.totalorder %s17, 2
      // Predicated region
      $region21: #{tpu_custom_call.1} parent=5 // pred_check
        %p235 = pneg %p234
      $region22: #{tpu_custom_call.1} parent=5 // pred_check_branch
        %237 = sbr.rel (%p235) target = $region24
      $region23: #{tpu_custom_call.1} parent=5 // pred_region
        // Predicated region
        $region25: #{tpu_custom_call.1} parent=23 // pred_check
          %p238 = pneg %p100
        $region26: #{tpu_custom_call.1} parent=23 // pred_check_branch
          %240 = sbr.rel (%p238) target = $region28
        $region27: #{tpu_custom_call.1} parent=23 // pred_region
          %s241 = sand.u32 %s17, 1
          %s242 = scalar_lea.sflag [#allocation16], %s241
          %s243 = sand.u32 %s90, 1
          %s244 = smul.addr %s243, 128
          %s245 = scalar_lea.vmem [#allocation15], %s244
          %p246 = scmp.lt.s32.totalorder %s25, 0
          %s247 = scalar_select %p246, %s25, 0
          %s248 = smul.u32 2, %s247
          %s250 = ssub.s32 2048, 2048
          %251 = vsyncadd %s242, %s250
          %s252 = smul.addr %s248, 64
          %s253 = scalar_lea.hbm %s2, %s252
          %s254 = sshll.u32 %s245, 4
          %s255 = int_to_ptr.vmem [resolvable:$true] %s254
          %260 = dma.hbm_to_vmem [thread:$0]  %s253, 2048, %s255, %s242, 128, 128, 8
        $region28: #{tpu_custom_call.1} parent=23 // pred_fallthru
          _
        // Predicated region
        $region29: #{tpu_custom_call.1} parent=23 // pred_check
          %p261 = pneg %p132
        $region30: #{tpu_custom_call.1} parent=23 // pred_check_branch
          %263 = sbr.rel (%p261) target = $region32
        $region31: #{tpu_custom_call.1} parent=23 // pred_region
          %s264 = sand.u32 %s17, 1
          %s265 = scalar_lea.sflag [#allocation16], %s264
          %s266 = sand.u32 %s122, 1
          %s267 = smul.addr %s266, 64
          %s268 = scalar_lea.vmem [#allocation17], %s267
          %s269 = ssub.s32 %s25, 1
          %p270 = scmp.gt.s32.totalorder %s269, 0
          %s271 = scalar_select %p270, %s269, 0
          %s272 = smul.u32 16, %s271
          %s274 = ssub.s32 1024, 1024
          %275 = vsyncadd %s265, %s274
          %s276 = smul.addr %s272, 64
          %s277 = scalar_lea.hbm %s3, %s276
          %s278 = sshll.u32 %s268, 4
          %s279 = int_to_ptr.vmem [resolvable:$true] %s278
          %284 = dma.hbm_to_vmem [thread:$0]  %s277, 1024, %s279, %s265, 64, 64, 4
        $region32: #{tpu_custom_call.1} parent=23 // pred_fallthru
          _
        // Predicated region
        $region33: #{tpu_custom_call.1} parent=23 // pred_check
          %p285 = pneg %p162
        $region34: #{tpu_custom_call.1} parent=23 // pred_check_branch
          %287 = sbr.rel (%p285) target = $region36
        $region35: #{tpu_custom_call.1} parent=23 // pred_region
          %p288 = scmp.lt.s32.totalorder %s25, 0
          %s289 = scalar_select %p288, %s25, 0
          %p290 = scmp.lt.s32.totalorder %s289, 0
          %s291 = scalar_select %p290, %s289, 0
          %s292 = scalar_lea.vmem %s4, %s291
          %p293 = scmp.lt.s32.totalorder %s25, 0
          %s294 = scalar_select %p293, %s25, 0
        $region36: #{tpu_custom_call.1} parent=23 // pred_fallthru
          _
      $region24: #{tpu_custom_call.1} parent=5 // pred_fallthru
        _
      %p295 = scmp.le.s32.totalorder 1, %s17
      %p296 = scmp.lt.s32.totalorder %s17, 3
      %p297 = pnand %p295, %p296
      %p298 = pneg %p297
      // Predicated region
      $region37: #{tpu_custom_call.1} parent=5 // pred_check
        _
      $region38: #{tpu_custom_call.1} parent=5 // pred_check_branch
        %300 = sbr.rel (%p297) target = $region40
      $region39: #{tpu_custom_call.1} parent=5 // pred_region
        %s301 = ssub.s32 %s17, 1
        // Predicated region
        $region41: #{tpu_custom_call.1} parent=39 // pred_check
          %p302 = pneg %p50
        $region42: #{tpu_custom_call.1} parent=39 // pred_check_branch
          %304 = sbr.rel (%p302) target = $region44
        $region43: #{tpu_custom_call.1} parent=39 // pred_region
          %305 = dma.done [#allocation13], 16
        $region44: #{tpu_custom_call.1} parent=39 // pred_fallthru
          _
        // Predicated region
        $region45: #{tpu_custom_call.1} parent=39 // pred_check
          %p306 = pneg %p76
        $region46: #{tpu_custom_call.1} parent=39 // pred_check_branch
          %308 = sbr.rel (%p306) target = $region48
        $region47: #{tpu_custom_call.1} parent=39 // pred_region
          %309 = dma.done [#allocation11], 256
        $region48: #{tpu_custom_call.1} parent=39 // pred_fallthru
          _
        %s310 = sand.u32 %s22, 1
        %s311 = scalar_lea.sflag [#allocation16], %s310
        %s312 = sand.u32 %s93, 1
        %s313 = smul.addr %s312, 128
        %s314 = scalar_lea.vmem [#allocation15], %s313
        // Predicated region
        $region49: #{tpu_custom_call.1} parent=39 // pred_check
          %p315 = pneg %p106
        $region50: #{tpu_custom_call.1} parent=39 // pred_check_branch
          %317 = sbr.rel (%p315) target = $region52
        $region51: #{tpu_custom_call.1} parent=39 // pred_region
          %318 = dma.done %s311, 2048
        $region52: #{tpu_custom_call.1} parent=39 // pred_fallthru
          _
        %s319 = sand.u32 %s22, 1
        %s320 = scalar_lea.sflag [#allocation16], %s319
        %s321 = sand.u32 %s125, 1
        %s322 = smul.addr %s321, 64
        %s323 = scalar_lea.vmem [#allocation17], %s322
        // Predicated region
        $region53: #{tpu_custom_call.1} parent=39 // pred_check
          %p324 = pneg %p138
        $region54: #{tpu_custom_call.1} parent=39 // pred_check_branch
          %326 = sbr.rel (%p324) target = $region56
        $region55: #{tpu_custom_call.1} parent=39 // pred_region
          %327 = dma.done %s320, 1024
        $region56: #{tpu_custom_call.1} parent=39 // pred_fallthru
          _
        %328 = sfence
        %p329 = pneg %p50
        %p330 = pneg %p47
        %p331 = pneg %p76
        %p332 = pneg %p73
        %s333 = sand.u32 %s22, 1
        %s334 = scalar_lea.sflag [#allocation16], %s333
        %s335 = sand.u32 %s93, 1
        %s336 = smul.addr %s335, 128
        %s337 = scalar_lea.vmem [#allocation15], %s336
        %p338 = pneg %p106
        %p339 = pneg %p103
        %s340 = sand.u32 %s22, 1
        %s341 = scalar_lea.sflag [#allocation16], %s340
        %s342 = sand.u32 %s125, 1
        %s343 = smul.addr %s342, 64
        %s344 = scalar_lea.vmem [#allocation17], %s343
        %p345 = pneg %p138
        %p346 = pneg %p135
        %p347 = scmp.lt.s32.totalorder %s27, 0
        %s348 = scalar_select %p347, %s27, 0
        %p349 = scmp.lt.s32.totalorder %s348, 0
        %s350 = scalar_select %p349, %s348, 0
        %s351 = scalar_lea.vmem %s4, %s350
        %p352 = pneg %p168
        %p353 = pneg %p165
        %p354 = pneg %p194
        %p355 = pneg %p191
        %s356 = smul.u32 2, %s26
        %p357 = scmp.lt.s32.totalorder %s27, 0
        %s358 = scalar_select %p357, %s27, 0
        %s359 = smul.u32 2, %s358
        %s360 = ssub.s32 %s27, 1
        %p361 = scmp.gt.s32.totalorder %s360, 0
        %s362 = scalar_select %p361, %s360, 0
        %s363 = smul.u32 16, %s362
        %p364 = scmp.lt.s32.totalorder %s27, 0
        %s365 = scalar_select %p364, %s27, 0
        %p366 = scmp.lt.s32.totalorder %s365, 0
        %s367 = scalar_select %p366, %s365, 0
        %s368 = scalar_lea.vmem %s4, %s367
        %p369 = scmp.lt.s32.totalorder %s27, 0
        %s370 = scalar_select %p369, %s27, 0
        %s371 = smul.u32 2, %s26
        %s373 = sld [smem:[#allocation10]]
        %s374 = sld [smem:[#allocation10 + $0x1]]
        %s375 = sld [smem:[#allocation10 + $0x2]]
        %p376 = scmp.eq.s32.totalorder %s27, 0
        // Predicated region
        $region57: #{tpu_custom_call.1} parent=39 // pred_check
          %p377 = pneg %p376
        $region58: #{tpu_custom_call.1} parent=39 // pred_check_branch
          %379 = sbr.rel (%p377) target = $region60
        $region59: #{tpu_custom_call.1} parent=39 // pred_region
          %v380 = vld [vmem:[#allocation14] sm:$0xff]
          %v381 = vld [vmem:[#allocation14 + $0x8] sm:$0xff]
          %v382 = vand.u32 2147483647, %v380
          %v383 = vand.u32 2147483647, %v381
          %384 = vmax.xlane.f32.xlu0 %v382
          %v385 = vpop.xlane.xlu0 %384
          %386 = vmax.xlane.f32.xlu0 %v383
          %v387 = vpop.xlane.xlu0 %386
          %v388 = vmax.f32 %v385, 1e-05
          %v389 = vmax.f32 %v387, 1e-05
          %v390 = vrcp.pop %v388
          %v391 = vmul.f32 127.0, %v390
          %v392 = vrcp.pop %v389
          %v393 = vmul.f32 127.0, %v392
          %v394 = vmul.f32 %v380, %v391
          %v395 = vmul.f32 %v381, %v393
          %v396 = vround.ne.pseudo %v394
          %v397 = vround.ne.pseudo %v395
          %v398 = vmax.f32 %v396, -128.0
          %v399 = vmax.f32 %v397, -128.0
          %v400 = vmin.f32 %v398, 127.0
          %v401 = vmin.f32 %v399, 127.0
          %v402 = vpack.c.bf16 %v401, %v400
          %403 = vst [vmem:[#allocation2] sm:$0xff] %v402
          %v404 = vmul.f32 %v388, 0.007874016
          %v405 = vmul.f32 %v389, 0.007874016
          %vm406 = vcmask 7168
          %407 = vst.msk [vmem:[#allocation3] sm:$0xff] %vm406, %v404
          %408 = vst.msk [vmem:[#allocation3 + $0x8] sm:$0xff] %vm406, %v405
          %409 = vst.msk [vmem:[#allocation5] sm:$0xff] %vm406, 0.0
          %410 = vst.msk [vmem:[#allocation5 + $0x8] sm:$0xff] %vm406, 0.0
          %411 = vst.msk [vmem:[#allocation6] sm:$0xff] %vm406, 0.0
          %412 = vst.msk [vmem:[#allocation6 + $0x8] sm:$0xff] %vm406, 0.0
        $region60: #{tpu_custom_call.1} parent=39 // pred_fallthru
          _
        %p413 = scmp.lt.s32.totalorder %s27, 1
        // Predicated region
        $region61: #{tpu_custom_call.1} parent=39 // pred_check
          %p414 = pneg %p413
        $region62: #{tpu_custom_call.1} parent=39 // pred_check_branch
          %416 = sbr.rel (%p414) target = $region64
        $region63: #{tpu_custom_call.1} parent=39 // pred_region
          %v417 = vld [vmem:[#allocation2] sm:$0xff]
          %v418 = vld [vmem:[%s314] sm:$0xff]
          %v419 = vld [vmem:[%s314 + $0x8] sm:$0xff]
          %v420 = vld [vmem:[%s314 + $0x10] sm:$0xff]
          %v421 = vld [vmem:[%s314 + $0x18] sm:$0xff]
          %v422 = vld [vmem:[%s314 + $0x20] sm:$0xff]
          %v423 = vld [vmem:[%s314 + $0x28] sm:$0xff]
          %v424 = vld [vmem:[%s314 + $0x30] sm:$0xff]
          %v425 = vld [vmem:[%s314 + $0x38] sm:$0xff]
          %v426 = vld [vmem:[%s314 + $0x40] sm:$0xff]
          %v427 = vld [vmem:[%s314 + $0x48] sm:$0xff]
          %v428 = vld [vmem:[%s314 + $0x50] sm:$0xff]
          %v429 = vld [vmem:[%s314 + $0x58] sm:$0xff]
          %v430 = vld [vmem:[%s314 + $0x60] sm:$0xff]
          %v431 = vld [vmem:[%s314 + $0x68] sm:$0xff]
          %v432 = vld [vmem:[%s314 + $0x70] sm:$0xff]
          %v433 = vld [vmem:[%s314 + $0x78] sm:$0xff]
          %v450 = vunpack.c.l.b16 %v418
          %v451 = vunpack.c.h.b16 %v418
          %v452 = vunpack.c.l.b16 %v419
          %v453 = vunpack.c.h.b16 %v419
          %v454 = vunpack.c.l.b16 %v420
          %v455 = vunpack.c.h.b16 %v420
          %v456 = vunpack.c.l.b16 %v421
          %v457 = vunpack.c.h.b16 %v421
          %v458 = vunpack.c.l.b16 %v422
          %v459 = vunpack.c.h.b16 %v422
          %v460 = vunpack.c.l.b16 %v423
          %v461 = vunpack.c.h.b16 %v423
          %v462 = vunpack.c.l.b16 %v424
          %v463 = vunpack.c.h.b16 %v424
          %v464 = vunpack.c.l.b16 %v425
          %v465 = vunpack.c.h.b16 %v425
          %v466 = vunpack.c.l.b16 %v426
          %v467 = vunpack.c.h.b16 %v426
          %v468 = vunpack.c.l.b16 %v427
          %v469 = vunpack.c.h.b16 %v427
          %v470 = vunpack.c.l.b16 %v428
          %v471 = vunpack.c.h.b16 %v428
          %v472 = vunpack.c.l.b16 %v429
          %v473 = vunpack.c.h.b16 %v429
          %v474 = vunpack.c.l.b16 %v430
          %v475 = vunpack.c.h.b16 %v430
          %v476 = vunpack.c.l.b16 %v431
          %v477 = vunpack.c.h.b16 %v431
          %v478 = vunpack.c.l.b16 %v432
          %v479 = vunpack.c.h.b16 %v432
          %v480 = vunpack.c.l.b16 %v433
          %v481 = vunpack.c.h.b16 %v433
          %v482 = vpack.c.b16 %v452, %v450
          %v483 = vpack.c.b16 %v453, %v451
          %v484 = vpack.c.b16 %v456, %v454
          %v485 = vpack.c.b16 %v457, %v455
          %v486 = vpack.c.b16 %v460, %v458
          %v487 = vpack.c.b16 %v461, %v459
          %v488 = vpack.c.b16 %v464, %v462
          %v489 = vpack.c.b16 %v465, %v463
          %v490 = vpack.c.b16 %v468, %v466
          %v491 = vpack.c.b16 %v469, %v467
          %v492 = vpack.c.b16 %v472, %v470
          %v493 = vpack.c.b16 %v473, %v471
          %v494 = vpack.c.b16 %v476, %v474
          %v495 = vpack.c.b16 %v477, %v475
          %v496 = vpack.c.b16 %v480, %v478
          %v497 = vpack.c.b16 %v481, %v479
          %514 = vmatprep.subr.bf16.mxu0 %v483
          %515 = vmatpush1.bf16.msra.mxu0 %v482
          %516 = vmatprep.subr.bf16.mxu0 %v485
          %517 = vmatpush1.bf16.msra.mxu0 %v484
          %518 = vmatprep.subr.bf16.mxu0 %v487
          %519 = vmatpush1.bf16.msra.mxu0 %v486
          %520 = vmatprep.subr.bf16.mxu0 %v489
          %521 = vmatpush1.bf16.msra.mxu0 %v488
          %522 = vmatprep.subr.bf16.mxu0 %v491
          %523 = vmatpush1.bf16.msra.mxu0 %v490
          %524 = vmatprep.subr.bf16.mxu0 %v493
          %525 = vmatpush1.bf16.msra.mxu0 %v492
          %526 = vmatprep.subr.bf16.mxu0 %v495
          %527 = vmatpush1.bf16.msra.mxu0 %v494
          %528 = vmatprep.subr.bf16.mxu0 %v497
          %529 = vmatpush1.bf16.msra.mxu0 %v496
          %530 = vmatprep.subr.bf16.mxu0 0
          %531 = vmatpush1.bf16.msra.mxu0 0
          %532 = vmatprep.subr.bf16.mxu0 0
          %533 = vmatpush1.bf16.msra.mxu0 0
          %534 = vmatprep.subr.bf16.mxu0 0
          %535 = vmatpush1.bf16.msra.mxu0 0
          %536 = vmatprep.subr.bf16.mxu0 0
          %537 = vmatpush1.bf16.msra.mxu0 0
          %538 = vmatprep.subr.bf16.mxu0 0
          %539 = vmatpush1.bf16.msra.mxu0 0
          %540 = vmatprep.subr.bf16.mxu0 0
          %541 = vmatpush1.bf16.msra.mxu0 0
          %542 = vmatprep.subr.bf16.mxu0 0
          %543 = vmatpush1.bf16.msra.mxu0 0
          %544 = vmatprep.subr.bf16.mxu0 0
          %545 = vmatpush1.bf16.msra.mxu0 0
          %546 = vmatprep.mubr.bf16.mxu0 0
          %547 = vmatmul.mubr.bf16.gmra.mrb[0].mxu0 %v417
          %v548 = vpop.f32.mrb[0].mxu0
          %v549 = vadd.f32 0.0, %v548
          %v550 = vpop.f32.mrb[0].mxu0
          %v551 = vadd.f32 0.0, %v550
          %v552 = vpop.f32.mrb[0].mxu0
          %v553 = vadd.f32 0.0, %v552
          %v554 = vpop.f32.mrb[0].mxu0
          %v555 = vadd.f32 0.0, %v554
          %556 = vdwg.mxu0
          %v557 = vld [vmem:[#allocation3] sm:$0xff]
          %v558 = vld [vmem:[#allocation3 + $0x8] sm:$0xff]
          %v559 = vstv %s373
          %v560 = vmul.f32 %v557, %v559
          %v561 = vmul.f32 %v558, %v559
          %563 = vset.pattern.permute.xlu0 0
          %564 = vperm.xlu0 %563, %v560
          %v565 = vpop.permute.xlu0 %564
          %568 = vset.pattern.permute.xlu0 0
          %569 = vperm.xlu0 %568, %v561
          %v570 = vpop.permute.xlu0 %569
          %v572 = vmul.f32 %v549, %v565
          %v573 = vmul.f32 %v553, %v570
          %v574 = vmax.f32 %v572, -30.0
          %v575 = vmax.f32 %v573, -30.0
          %v576 = vmin.f32 %v574, 30.0
          %v577 = vmin.f32 %v575, 30.0
          %v578 = vsub.f32 0.0, %v576
          %v579 = vsub.f32 0.0, %v577
          %v580 = vmul.f32 %v578, 1.442695
          %v581 = vpow.pop %v580
          %v582 = vmul.f32 %v579, 1.442695
          %v583 = vpow.pop %v582
          %v584 = vadd.f32 %v581, 1.0
          %v585 = vadd.f32 %v583, 1.0
          %v586 = vrcp.pop %v584
          %v587 = vrcp.pop %v585
          %v588 = vmul.f32 %v572, %v586
          %v589 = vmul.f32 %v573, %v587
          %v590 = vmul.f32 %v588, %v551
          %v591 = vmul.f32 %v589, %v555
          %v592 = vld [vmem:[%s368] sm:$0x1]
          %v594 = vlaneseq
          %v595 = vshrl.u32 %v594, 7
          %v596 = vsub.s32 0, %v595
          %v597 = vrot.slane %v592, %v596
          %v599 = vmul.f32 %v590, %v597
          %v600 = vmul.f32 %v591, %v597
          %v601 = vld [vmem:[#allocation5] sm:$0xff]
          %v602 = vld [vmem:[#allocation5 + $0x8] sm:$0xff]
          %v603 = vmul.f32 %v590, %v590
          %v604 = vmul.f32 %v591, %v591
          %605 = vadd.xlane.f32.xlu0 %v603
          %v606 = vpop.xlane.xlu0 %605
          %607 = vadd.xlane.f32.xlu0 %v604
          %v608 = vpop.xlane.xlu0 %607
          %v609 = vadd.f32 %v601, %v606
          %v610 = vadd.f32 %v602, %v608
          %vm611 = vcmask 7168
          %612 = vst.msk [vmem:[#allocation5] sm:$0xff] %vm611, %v609
          %613 = vst.msk [vmem:[#allocation5 + $0x8] sm:$0xff] %vm611, %v610
          %v614 = vld [vmem:[#allocation6] sm:$0xff]
          %v615 = vld [vmem:[#allocation6 + $0x8] sm:$0xff]
          %v616 = vand.u32 2147483647, %v599
          %v617 = vand.u32 2147483647, %v600
          %618 = vmax.xlane.f32.xlu0 %v616
          %v619 = vpop.xlane.xlu0 %618
          %620 = vmax.xlane.f32.xlu0 %v617
          %v621 = vpop.xlane.xlu0 %620
          %v622 = vmax.f32 %v614, %v619
          %v623 = vmax.f32 %v615, %v621
          %624 = vst.msk [vmem:[#allocation6] sm:$0xff] %vm611, %v622
          %625 = vst.msk [vmem:[#allocation6 + $0x8] sm:$0xff] %vm611, %v623
          %s626 = smul.u32 %s27, 16
          %s627 = scalar_lea.vmem [#allocation4], %s626
          %628 = vst [vmem:[%s627] sm:$0xff] %v599
          %629 = vst [vmem:[%s627 + $0x8] sm:$0xff] %v600
        $region64: #{tpu_custom_call.1} parent=39 // pred_fallthru
          _
        %p630 = scmp.eq.s32.totalorder %s27, 1
        // Predicated region
        $region65: #{tpu_custom_call.1} parent=39 // pred_check
          %p631 = pneg %p630
        $region66: #{tpu_custom_call.1} parent=39 // pred_check_branch
          %633 = sbr.rel (%p631) target = $region68
        $region67: #{tpu_custom_call.1} parent=39 // pred_region
          %v634 = vld [vmem:[#allocation3] sm:$0xff]
          %v635 = vld [vmem:[#allocation3 + $0x8] sm:$0xff]
          %v636 = vstv %s374
          %v637 = vmul.f32 %v634, %v636
          %v638 = vmul.f32 %v635, %v636
          %v639 = vld [vmem:[#allocation5] sm:$0xff]
          %v640 = vld [vmem:[#allocation5 + $0x8] sm:$0xff]
          %v641 = vmul.f32 %v639, 0.015625
          %v642 = vmul.f32 %v640, 0.015625
          %v643 = vmul.f32 %v637, %v637
          %v644 = vmul.f32 %v638, %v638
          %v645 = vrcp.pop %v643
          %v646 = vmul.f32 1e-06, %v645
          %v647 = vrcp.pop %v644
          %v648 = vmul.f32 1e-06, %v647
          %v649 = vadd.f32 %v641, %v646
          %v650 = vadd.f32 %v642, %v648
          %v651 = vrsqrt.pop %v649
          %v652 = vrsqrt.pop %v650
          %v653 = vld [vmem:[#allocation6] sm:$0xff]
          %v654 = vld [vmem:[#allocation6 + $0x8] sm:$0xff]
          %v655 = vmul.f32 %v651, %v653
          %v656 = vmul.f32 %v652, %v654
          %v657 = vmax.f32 %v655, 1e-05
          %v658 = vmax.f32 %v656, 1e-05
          %v659 = vrcp.pop %v657
          %v660 = vmul.f32 127.0, %v659
          %v661 = vrcp.pop %v658
          %v662 = vmul.f32 127.0, %v661
          %v663 = vmul.f32 %v651, %v660
          %v664 = vmul.f32 %v652, %v662
          %vm665 = vcmask 7168
          %666 = vst.msk [vmem:[#allocation7] sm:$0xff] %vm665, %v663
          %667 = vst.msk [vmem:[#allocation7 + $0x8] sm:$0xff] %vm665, %v664
          %v668 = vrcp.pop 127.0
          %s669 = vtos %v668
          %s670 = smul.f32 %s375, %s669
          %v671 = vstv %s670
          %v672 = vmul.f32 %v657, %v671
          %v673 = vmul.f32 %v658, %v671
          %674 = vst.msk [vmem:[#allocation8] sm:$0xff] %vm665, %v672
          %675 = vst.msk [vmem:[#allocation8 + $0x8] sm:$0xff] %vm665, %v673
          %676 = vst [vmem:[#allocation9] sm:$0xff] 0.0
          %677 = vst [vmem:[#allocation9 + $0x8] sm:$0xff] 0.0
        $region68: #{tpu_custom_call.1} parent=39 // pred_fallthru
          _
        %p678 = scmp.ge.s32.totalorder %s27, 1
        // Predicated region
        $region69: #{tpu_custom_call.1} parent=39 // pred_check
          %p679 = pneg %p678
        $region70: #{tpu_custom_call.1} parent=39 // pred_check_branch
          %681 = sbr.rel (%p679) target = $region72
        $region71: #{tpu_custom_call.1} parent=39 // pred_region
          %s682 = ssub.s32 %s27, 1
          %s683 = smul.u32 %s682, 16
          %s684 = scalar_lea.vmem [#allocation4], %s683
          %v685 = vld [vmem:[%s684] sm:$0xff]
          %v686 = vld [vmem:[%s684 + $0x8] sm:$0xff]
          %v687 = vld [vmem:[#allocation7] sm:$0xff]
          %v688 = vld [vmem:[#allocation7 + $0x8] sm:$0xff]
          %690 = vset.pattern.permute.xlu0 0
          %691 = vperm.xlu0 %690, %v687
          %v692 = vpop.permute.xlu0 %691
          %695 = vset.pattern.permute.xlu0 0
          %696 = vperm.xlu0 %695, %v688
          %v697 = vpop.permute.xlu0 %696
          %v699 = vmul.f32 %v685, %v692
          %v700 = vmul.f32 %v686, %v697
          %v701 = vround.ne.pseudo %v699
          %v702 = vround.ne.pseudo %v700
          %v703 = vmax.f32 %v701, -128.0
          %v704 = vmax.f32 %v702, -128.0
          %v705 = vmin.f32 %v703, 127.0
          %v706 = vmin.f32 %v704, 127.0
          %v707 = vpack.c.bf16 %v706, %v705
          %v708 = vld [vmem:[%s323] sm:$0xf]
          %v709 = vld [vmem:[%s323 + $0x4] sm:$0xf]
          %v710 = vld [vmem:[%s323 + $0x8] sm:$0xf]
          %v711 = vld [vmem:[%s323 + $0xc] sm:$0xf]
          %v712 = vld [vmem:[%s323 + $0x10] sm:$0xf]
          %v713 = vld [vmem:[%s323 + $0x14] sm:$0xf]
          %v714 = vld [vmem:[%s323 + $0x18] sm:$0xf]
          %v715 = vld [vmem:[%s323 + $0x1c] sm:$0xf]
          %v716 = vld [vmem:[%s323 + $0x20] sm:$0xf]
          %v717 = vld [vmem:[%s323 + $0x24] sm:$0xf]
          %v718 = vld [vmem:[%s323 + $0x28] sm:$0xf]
          %v719 = vld [vmem:[%s323 + $0x2c] sm:$0xf]
          %v720 = vld [vmem:[%s323 + $0x30] sm:$0xf]
          %v721 = vld [vmem:[%s323 + $0x34] sm:$0xf]
          %v722 = vld [vmem:[%s323 + $0x38] sm:$0xf]
          %v723 = vld [vmem:[%s323 + $0x3c] sm:$0xf]
          %v740 = vunpack.c.l.b16 %v708
          %v741 = vunpack.c.l.b16 %v709
          %v742 = vunpack.c.l.b16 %v710
          %v743 = vunpack.c.l.b16 %v711
          %v744 = vunpack.c.l.b16 %v712
          %v745 = vunpack.c.l.b16 %v713
          %v746 = vunpack.c.l.b16 %v714
          %v747 = vunpack.c.l.b16 %v715
          %v748 = vunpack.c.l.b16 %v716
          %v749 = vunpack.c.l.b16 %v717
          %v750 = vunpack.c.l.b16 %v718
          %v751 = vunpack.c.l.b16 %v719
          %v752 = vunpack.c.l.b16 %v720
          %v753 = vunpack.c.l.b16 %v721
          %v754 = vunpack.c.l.b16 %v722
          %v755 = vunpack.c.l.b16 %v723
          %v756 = vpack.c.b16 %v741, %v740
          %v757 = vpack.c.b16 %v743, %v742
          %v758 = vpack.c.b16 %v745, %v744
          %v759 = vpack.c.b16 %v747, %v746
          %v760 = vpack.c.b16 %v749, %v748
          %v761 = vpack.c.b16 %v751, %v750
          %v762 = vpack.c.b16 %v753, %v752
          %v763 = vpack.c.b16 %v755, %v754
          %772 = vmatprep.subr.bf16.mxu0 0
          %773 = vmatpush1.bf16.msra.mxu0 %v756
          %774 = vmatprep.subr.bf16.mxu0 0
          %775 = vmatpush1.bf16.msra.mxu0 %v757
          %776 = vmatprep.subr.bf16.mxu0 0
          %777 = vmatpush1.bf16.msra.mxu0 %v758
          %778 = vmatprep.subr.bf16.mxu0 0
          %779 = vmatpush1.bf16.msra.mxu0 %v759
          %780 = vmatprep.subr.bf16.mxu0 0
          %781 = vmatpush1.bf16.msra.mxu0 %v760
          %782 = vmatprep.subr.bf16.mxu0 0
          %783 = vmatpush1.bf16.msra.mxu0 %v761
          %784 = vmatprep.subr.bf16.mxu0 0
          %785 = vmatpush1.bf16.msra.mxu0 %v762
          %786 = vmatprep.subr.bf16.mxu0 0
          %787 = vmatpush1.bf16.msra.mxu0 %v763
          %788 = vmatprep.subr.bf16.mxu0 0
          %789 = vmatpush1.bf16.msra.mxu0 0
          %790 = vmatprep.subr.bf16.mxu0 0
          %791 = vmatpush1.bf16.msra.mxu0 0
          %792 = vmatprep.subr.bf16.mxu0 0
          %793 = vmatpush1.bf16.msra.mxu0 0
          %794 = vmatprep.subr.bf16.mxu0 0
          %795 = vmatpush1.bf16.msra.mxu0 0
          %796 = vmatprep.subr.bf16.mxu0 0
          %797 = vmatpush1.bf16.msra.mxu0 0
          %798 = vmatprep.subr.bf16.mxu0 0
          %799 = vmatpush1.bf16.msra.mxu0 0
          %800 = vmatprep.subr.bf16.mxu0 0
          %801 = vmatpush1.bf16.msra.mxu0 0
          %802 = vmatprep.subr.bf16.mxu0 0
          %803 = vmatpush1.bf16.msra.mxu0 0
          %804 = vmatprep.mubr.bf16.mxu0 0
          %805 = vmatmul.mubr.bf16.gmra.mrb[0].mxu0 %v707
          %v806 = vpop.f32.mrb[0].mxu0
          %v807 = vadd.f32 0.0, %v806
          %v808 = vpop.f32.mrb[0].mxu0
          %v809 = vpop.f32.mrb[0].mxu0
          %v810 = vadd.f32 0.0, %v809
          %v811 = vpop.f32.mrb[0].mxu0
          %812 = vdwg.mxu0
          %v813 = vld [vmem:[#allocation9] sm:$0xff]
          %v814 = vld [vmem:[#allocation9 + $0x8] sm:$0xff]
          %v815 = vadd.f32 %v813, %v807
          %v816 = vadd.f32 %v814, %v810
          %817 = vst [vmem:[#allocation9] sm:$0xff] %v815
          %818 = vst [vmem:[#allocation9 + $0x8] sm:$0xff] %v816
        $region72: #{tpu_custom_call.1} parent=39 // pred_fallthru
          _
        // Predicated region
        $region73: #{tpu_custom_call.1} parent=39 // pred_check
          %p819 = pneg %p630
        $region74: #{tpu_custom_call.1} parent=39 // pred_check_branch
          %821 = sbr.rel (%p819) target = $region76
        $region75: #{tpu_custom_call.1} parent=39 // pred_region
          %v822 = vld [vmem:[#allocation9] sm:$0xff]
          %v823 = vld [vmem:[#allocation9 + $0x8] sm:$0xff]
          %v824 = vld [vmem:[#allocation8] sm:$0xff]
          %v825 = vld [vmem:[#allocation8 + $0x8] sm:$0xff]
          %827 = vset.pattern.permute.xlu0 0
          %828 = vperm.xlu0 %827, %v824
          %v829 = vpop.permute.xlu0 %828
          %832 = vset.pattern.permute.xlu0 0
          %833 = vperm.xlu0 %832, %v825
          %v834 = vpop.permute.xlu0 %833
          %v836 = vmul.f32 %v822, %v829
          %v837 = vmul.f32 %v823, %v834
          %838 = vst [vmem:[#allocation18] sm:$0xff] %v836
          %839 = vst [vmem:[#allocation18 + $0x8] sm:$0xff] %v837
        $region76: #{tpu_custom_call.1} parent=39 // pred_fallthru
          _
        // Predicated region
        $region77: #{tpu_custom_call.1} parent=39 // pred_check
          %p840 = pneg %p191
        $region78: #{tpu_custom_call.1} parent=39 // pred_check_branch
          %842 = sbr.rel (%p840) target = $region80
        $region79: #{tpu_custom_call.1} parent=39 // pred_region
          %s843 = smul.u32 2, %s26
          %s845 = ssub.s32 256, 256
          %846 = vsyncadd [#allocation12], %s845
          %s847 = smul.addr %s843, 128
          %s848 = scalar_lea.hbm %s5, %s847
          %s849 = sshll.u32 [#allocation18], 4
          %s850 = int_to_ptr.vmem [resolvable:$true] %s849
          %855 = dma.vmem_to_hbm [thread:$0]  %s850, 256, %s848, [#allocation12], 128, 128, 8
        $region80: #{tpu_custom_call.1} parent=39 // pred_fallthru
          _
        // Predicated region
        $region81: #{tpu_custom_call.1} parent=39 // pred_check
          %p856 = pneg %p191
        $region82: #{tpu_custom_call.1} parent=39 // pred_check_branch
          %858 = sbr.rel (%p856) target = $region84
        $region83: #{tpu_custom_call.1} parent=39 // pred_region
          %859 = dma.done [#allocation12], 256
        $region84: #{tpu_custom_call.1} parent=39 // pred_fallthru
          _
      $region40: #{tpu_custom_call.1} parent=5 // pred_fallthru
        _
      %p860 = scmp.le.s32.totalorder 2, %s17
      // Predicated region
      $region85: #{tpu_custom_call.1} parent=5 // pred_check
        %p861 = pneg %p860
      $region86: #{tpu_custom_call.1} parent=5 // pred_check_branch
        %863 = sbr.rel (%p861) target = $region88
      $region87: #{tpu_custom_call.1} parent=5 // pred_region
        %s864 = ssub.s32 %s17, 2
      $region88: #{tpu_custom_call.1} parent=5 // pred_fallthru
        _
    $region6: #{tpu_custom_call.1} parent=1 // loop_footer
      %s21 = sadd.s32 1, %s17
    $region7: #{tpu_custom_call.1} parent=1 // loop_footer_branch
      %16 = sbr.rel target = $region3
    $region8: #{tpu_custom_call.1} parent=1 // loop_exit
      _
    %865 = vsyncpa [#allocation11], 1
    %s866 = scalar_lea.sflag [#allocation11], 1
    %867 = vsyncpa %s866, 1
    %868 = vsyncpa [#allocation16], 1
    %s869 = scalar_lea.sflag [#allocation16], 1
    %870 = vsyncpa %s869, 1
    %871 = vsyncpa [#allocation12], 1
    %s872 = scalar_lea.sflag [#allocation12], 1
    %873 = vsyncpa %s872, 1
    %874 = vsyncpa [#allocation13], 1
    %s875 = scalar_lea.sflag [#allocation13], 1
    %876 = vsyncpa %s875, 1

</llo_original>
